<compile_context>
chip_gen: v7x
topology: tpu7x:2x2x1
jax: 0.10.0
libtpu: 0.0.40
codegen_flags: <defaults>
</compile_context>

<pallas_src>
import math

import jax
import jax.numpy as jnp
from jax.experimental import pallas as pl
from jax.experimental.pallas import tpu as pltpu

# ----------------------------- model config ---------------------------------
D_MODEL = 32
NUM_HEADS = 4
D_FF = 64
D_K = D_MODEL // NUM_HEADS
BATCH = 2
SEQ = 8
BS = BATCH * SEQ                       # flattened token count
HBS = NUM_HEADS * BS                   # head-stacked row count (64)
LN_EPS = 1e-5                          # PyTorch nn.LayerNorm default
NEG_INF = -1e9

SLAB_LANES = 128
# row offsets inside the packed parameter slab (big blocks start at multiples of 8)
_R_WQKV = 0            # rows   0- 31, lanes 0-95   : fused (W_q*scale | W_k | W_v)
_R_WO = 32             # rows  32- 63, lanes 0-31   : W_o
_R_W1 = 64             # rows  64- 95, lanes 0-63   : W1
_R_W2 = 96             # rows  96-159, lanes 0-31   : W2
_R_HSEL = 160          # rows 160-223, lanes 0-31   : per-head lane selector, expanded
_R_VECS = 224          # rows 224-231               : bqkv, bo, b1, b2, g1, be1, g2, be2
SLAB_ROWS = 232


# ------------------------------ Pallas kernel -------------------------------
def _layer_norm(x, gamma, beta):
    # x: (BS, D); gamma/beta: (1, D).  Biased variance, like nn.LayerNorm.
    mean = jnp.mean(x, axis=-1, keepdims=True)
    var = jnp.mean((x - mean) ** 2, axis=-1, keepdims=True)
    return (x - mean) * jax.lax.rsqrt(var + LN_EPS) * gamma + beta


def encoder_layer_kernel(x_ref, bias_ref, p_ref, out_ref):
    x = x_ref[...].astype(jnp.float32)                          # (BS, D)
    bias = bias_ref[...]                                        # (H*BS, BS), additive

    # ---- unpack the single parameter slab (static, tile-friendly slices) ----
    wqkv = p_ref[_R_WQKV:_R_WQKV + D_MODEL, :]                  # (D, 128), lanes>=96 zero
    wo = p_ref[_R_WO:_R_WO + D_MODEL, 0:D_MODEL]                # (D, D)
    w1 = p_ref[_R_W1:_R_W1 + D_MODEL, 0:D_FF]                   # (D, D_FF)
    w2 = p_ref[_R_W2:_R_W2 + D_FF, 0:D_MODEL]                   # (D_FF, D)
    hsel = p_ref[_R_HSEL:_R_HSEL + HBS, 0:D_MODEL]              # (H*BS, D) head lane mask
    vecs = p_ref[_R_VECS:_R_VECS + 8, :]                        # (8, 128) small vectors
    bqkv = vecs[0:1, :]                                         # (1, 128), lanes>=96 zero
    bo = vecs[1:2, 0:D_MODEL]
    b1 = vecs[2:3, 0:D_FF]
    b2 = vecs[3:4, 0:D_MODEL]
    g1 = vecs[4:5, 0:D_MODEL]
    be1 = vecs[5:6, 0:D_MODEL]
    g2 = vecs[6:7, 0:D_MODEL]
    be2 = vecs[7:8, 0:D_MODEL]

    # ---- fused QKV projection (1/sqrt(d_k) folded into W_q/b_q host-side) ----
    qkv = jnp.dot(x, wqkv, preferred_element_type=jnp.float32) + bqkv   # (BS, 128)
    q = qkv[:, 0 * D_MODEL:1 * D_MODEL]                         # (BS, D), pre-scaled
    k = qkv[:, 1 * D_MODEL:2 * D_MODEL]
    v = qkv[:, 2 * D_MODEL:3 * D_MODEL]

    # ---- head-stacked attention: 1 score matmul + 1 softmax + 1 ctx matmul ----
    # Qs block h keeps only head-h lanes of q; contracting with full k gives
    # q_h . k_h per block (zeroed lanes contribute nothing).
    q4 = jnp.concatenate([q, q, q, q], axis=0)                  # (H*BS, D) sublane stack
    qs = q4 * hsel                                              # per-block head lane mask
    scores = jax.lax.dot_general(
        qs, k, (((1,), (1,)), ((), ())),
        preferred_element_type=jnp.float32)                     # (H*BS, BS)
    scores = scores + bias                                      # mask + cross-batch block
    m = jnp.max(scores, axis=-1, keepdims=True)
    e = jnp.exp(scores - m)
    p = e * pl.reciprocal(jnp.sum(e, axis=-1, keepdims=True), approx=True)
    ctx = jnp.dot(p, v, preferred_element_type=jnp.float32) * hsel      # (H*BS, D)
    # each block holds head h's output in its own lanes; sum blocks to combine heads
    attn = (ctx[0 * BS:1 * BS, :] + ctx[1 * BS:2 * BS, :]
            + ctx[2 * BS:3 * BS, :] + ctx[3 * BS:4 * BS, :])            # (BS, D)

    # ---- output projection + residual + LayerNorm 1 (dropout = identity) ----
    attn = jnp.dot(attn, wo, preferred_element_type=jnp.float32) + bo
    h1 = _layer_norm(x + attn, g1, be1)

    # ---- position-wise feed-forward + residual + LayerNorm 2 ----
    ff = jnp.maximum(jnp.dot(h1, w1, preferred_element_type=jnp.float32) + b1, 0.0)
    ff = jnp.dot(ff, w2, preferred_element_type=jnp.float32) + b2
    out_ref[...] = _layer_norm(h1 + ff, g2, be2).astype(out_ref.dtype)


# --------------------------- host-side param prep ---------------------------
def prepare_params(p):
    """One-off host-side transform: fuse QKV, fold 1/sqrt(d_k) into W_q/b_q,
    and pack EVERY parameter into one lane-dense (SLAB_ROWS, 128) f32 slab."""
    scale = 1.0 / math.sqrt(D_K)
    wqkv = jnp.concatenate([p["wq"] * scale, p["wk"], p["wv"]], axis=1)   # (D, 3D)
    bqkv = jnp.concatenate([p["bq"] * scale, p["bk"], p["bv"]], axis=1)   # (1, 3D)

    # per-head lane selector, expanded to the head-stacked row layout (H*BS, D)
    head_of_lane = jnp.arange(D_MODEL, dtype=jnp.int32) // D_K            # (D,)
    hsel = (head_of_lane[None, :] ==
            jnp.arange(NUM_HEADS, dtype=jnp.int32)[:, None]).astype(jnp.float32)
    hsel64 = jnp.repeat(hsel, BS, axis=0)                                 # (H*BS, D)

    slab = jnp.zeros((SLAB_ROWS, SLAB_LANES), jnp.float32)

    def put(s, row, arr):
        r, c = arr.shape
        return s.at[row:row + r, 0:c].set(arr.astype(jnp.float32))

    slab = put(slab, _R_WQKV, wqkv)
    slab = put(slab, _R_WO, p["wo"])
    slab = put(slab, _R_W1, p["w1"])
    slab = put(slab, _R_W2, p["w2"])
    slab = put(slab, _R_HSEL, hsel64)
    for i, v in enumerate([bqkv, p["bo"], p["b1"], p["b2"],
                           p["g1"], p["be1"], p["g2"], p["be2"]]):
        slab = put(slab, _R_VECS + i, v)
    return slab


def prepare_bias(mask):
    """Precompute the additive attention bias once per mask (reusable across
    every head and every layer of a stack).

    mask: (B, S, S) float, 0 => masked.  Returns (H*BS, BS) f32:
    block-diagonal over batches, -1e9 on masked / cross-batch entries,
    tiled over the NUM_HEADS sublane blocks used by the head-stacked kernel."""
    B, S, _ = mask.shape
    bias = jnp.full((B * S, B * S), NEG_INF, jnp.float32)
    for b in range(B):
        blk = jnp.where(mask[b] != 0.0, 0.0, NEG_INF).astype(jnp.float32)
        bias = bias.at[b * S:(b + 1) * S, b * S:(b + 1) * S].set(blk)
    return jnp.tile(bias, (NUM_HEADS, 1))                                 # (H*BS, BS)


# ------------------------------ host wrapper ---------------------------------
def encoder_layer_pallas(x, bias, slab):
    """x: (B, S, D) float32; bias: (H*B*S, B*S) f32; slab: packed params."""
    B, S, D = x.shape
    x2 = x.reshape(B * S, D)        # free row-major reshape outside the kernel
    vmem = pl.BlockSpec(memory_space=pltpu.MemorySpace.VMEM)
    out = pl.pallas_call(
        encoder_layer_kernel,
        out_shape=jax.ShapeDtypeStruct((B * S, D), x.dtype),
        in_specs=[vmem, vmem, vmem],
        out_specs=vmem,
    )(x2, bias, slab)
    return out.reshape(B, S, D)


# --------------------------- pure-JAX reference ------------------------------
def encoder_layer_ref(x, mask, p):
    def ln(z, g, b):
        mu = jnp.mean(z, axis=-1, keepdims=True)
        var = jnp.mean((z - mu) ** 2, axis=-1, keepdims=True)
        return (z - mu) / jnp.sqrt(var + LN_EPS) * g + b

    q = x @ p["wq"] + p["bq"]
    k = x @ p["wk"] + p["bk"]
    v = x @ p["wv"] + p["bv"]
    B, S, D = x.shape

    def split(t):
        return t.reshape(B, S, NUM_HEADS, D_K).transpose(0, 2, 1, 3)

    qh, kh, vh = split(q), split(k), split(v)
    scores = jnp.einsum("bhqd,bhkd->bhqk", qh, kh) / math.sqrt(D_K)
    scores = jnp.where(mask[:, None, :, :] == 0, -1e9, scores)
    probs = jax.nn.softmax(scores, axis=-1)
    attn = jnp.einsum("bhqk,bhkd->bhqd", probs, vh)
    attn = attn.transpose(0, 2, 1, 3).reshape(B, S, D)
    attn = attn @ p["wo"] + p["bo"]
    h1 = ln(x + attn, p["g1"], p["be1"])
    ff = jnp.maximum(h1 @ p["w1"] + p["b1"], 0.0) @ p["w2"] + p["b2"]
    return ln(h1 + ff, p["g2"], p["be2"])


# ---------------------------------- main -------------------------------------
def init_params(key):
    ks = jax.random.split(key, 8)
    scale = 0.1
    return {
        # weights stored as (in, out) == W.T of the PyTorch nn.Linear weight
        "wq": jax.random.normal(ks[0], (D_MODEL, D_MODEL), jnp.float32) * scale,
        "wk": jax.random.normal(ks[1], (D_MODEL, D_MODEL), jnp.float32) * scale,
        "wv": jax.random.normal(ks[2], (D_MODEL, D_MODEL), jnp.float32) * scale,
        "wo": jax.random.normal(ks[3], (D_MODEL, D_MODEL), jnp.float32) * scale,
        "w1": jax.random.normal(ks[4], (D_MODEL, D_FF), jnp.float32) * scale,
        "w2": jax.random.normal(ks[5], (D_FF, D_MODEL), jnp.float32) * scale,
        "bq": jax.random.normal(ks[6], (1, D_MODEL), jnp.float32) * scale,
        "bk": jnp.zeros((1, D_MODEL), jnp.float32),
        "bv": jnp.full((1, D_MODEL), 0.01, jnp.float32),
        "bo": jnp.zeros((1, D_MODEL), jnp.float32),
        "b1": jnp.zeros((1, D_FF), jnp.float32),
        "b2": jnp.zeros((1, D_MODEL), jnp.float32),
        # LayerNorm affine params (PyTorch init: ones / zeros)
        "g1": jnp.ones((1, D_MODEL), jnp.float32),
        "be1": jnp.zeros((1, D_MODEL), jnp.float32),
        "g2": jnp.ones((1, D_MODEL), jnp.float32),
        "be2": jnp.zeros((1, D_MODEL), jnp.float32),
    }


if __name__ == "__main__":
    key = jax.random.PRNGKey(0)
    kx, kp = jax.random.split(key)
    x = jax.random.normal(kx, (BATCH, SEQ, D_MODEL), jnp.float32)
    # lower-triangular (causal-style) mask, shape (B, S, S); 0 => masked out
    mask = jnp.broadcast_to(
        jnp.tril(jnp.ones((SEQ, SEQ), jnp.float32)), (BATCH, SEQ, SEQ)
    )
    params = init_params(kp)
    slab = prepare_params(params)
    bias = prepare_bias(mask)

    out = encoder_layer_pallas(x, bias, slab)
    out = jax.block_until_ready(out)

    ref = encoder_layer_ref(x, mask, params)
    assert out.shape == (BATCH, SEQ, D_MODEL)
    err = jnp.max(jnp.abs(out - ref))
    # tolerance loosened slightly to cover the EUP approximate-reciprocal softmax
    assert jnp.allclose(out, ref, atol=2e-3, rtol=2e-3), f"max abs err {err}"
    print("KERNEL_OK")
</pallas_src>

<mosaic_0001>
module attributes {stable_mosaic.version = 11 : i64} {
  func.func @encoder_layer_kernel(%arg0: memref<16x32xf32, #tpu.memory_space<vmem>>, %arg1: memref<64x16xf32, #tpu.memory_space<vmem>>, %arg2: memref<232x128xf32, #tpu.memory_space<vmem>>, %arg3: memref<16x32xf32, #tpu.memory_space<vmem>>) attributes {dimension_semantics = [], scalar_prefetch = 0 : i64, scratch_operands = 0 : i64, tpu.core_type = #tpu.core_type<tc>} {
    %c0 = arith.constant 0 : index
    %c0_0 = arith.constant 0 : index
    %0 = vector.load %arg0[%c0, %c0_0] : memref<16x32xf32, #tpu.memory_space<vmem>>, vector<16x32xf32>
    %c0_1 = arith.constant 0 : index
    %c0_2 = arith.constant 0 : index
    %1 = vector.load %arg1[%c0_1, %c0_2] : memref<64x16xf32, #tpu.memory_space<vmem>>, vector<64x16xf32>
    %c0_3 = arith.constant 0 : index
    %c0_4 = arith.constant 0 : index
    %2 = vector.load %arg2[%c0_3, %c0_4] : memref<232x128xf32, #tpu.memory_space<vmem>>, vector<32x128xf32>
    %c32 = arith.constant 32 : index
    %c0_5 = arith.constant 0 : index
    %3 = vector.load %arg2[%c32, %c0_5] : memref<232x128xf32, #tpu.memory_space<vmem>>, vector<32x32xf32>
    %c64 = arith.constant 64 : index
    %c0_6 = arith.constant 0 : index
    %4 = vector.load %arg2[%c64, %c0_6] : memref<232x128xf32, #tpu.memory_space<vmem>>, vector<32x64xf32>
    %c96 = arith.constant 96 : index
    %c0_7 = arith.constant 0 : index
    %5 = vector.load %arg2[%c96, %c0_7] : memref<232x128xf32, #tpu.memory_space<vmem>>, vector<64x32xf32>
    %c160 = arith.constant 160 : index
    %c0_8 = arith.constant 0 : index
    %6 = vector.load %arg2[%c160, %c0_8] : memref<232x128xf32, #tpu.memory_space<vmem>>, vector<64x32xf32>
    %c224 = arith.constant 224 : index
    %c0_9 = arith.constant 0 : index
    %7 = vector.load %arg2[%c224, %c0_9] : memref<232x128xf32, #tpu.memory_space<vmem>>, vector<8x128xf32>
    %8 = vector.extract_strided_slice %7 {offsets = [0, 0], sizes = [1, 128], strides = [1, 1]} : vector<8x128xf32> to vector<1x128xf32>
    %9 = vector.extract_strided_slice %7 {offsets = [1, 0], sizes = [1, 32], strides = [1, 1]} : vector<8x128xf32> to vector<1x32xf32>
    %10 = vector.extract_strided_slice %7 {offsets = [2, 0], sizes = [1, 64], strides = [1, 1]} : vector<8x128xf32> to vector<1x64xf32>
    %11 = vector.extract_strided_slice %7 {offsets = [3, 0], sizes = [1, 32], strides = [1, 1]} : vector<8x128xf32> to vector<1x32xf32>
    %12 = vector.extract_strided_slice %7 {offsets = [4, 0], sizes = [1, 32], strides = [1, 1]} : vector<8x128xf32> to vector<1x32xf32>
    %13 = vector.extract_strided_slice %7 {offsets = [5, 0], sizes = [1, 32], strides = [1, 1]} : vector<8x128xf32> to vector<1x32xf32>
    %14 = vector.extract_strided_slice %7 {offsets = [6, 0], sizes = [1, 32], strides = [1, 1]} : vector<8x128xf32> to vector<1x32xf32>
    %15 = vector.extract_strided_slice %7 {offsets = [7, 0], sizes = [1, 32], strides = [1, 1]} : vector<8x128xf32> to vector<1x32xf32>
    %cst = arith.constant dense<0.000000e+00> : vector<16x128xf32>
    %16 = tpu.matmul %0, %2, %cst {dimension_numbers = #tpu.dot_dimension_numbers<[1], [0], [0], [1], [0, 0, 1, 1], [], []>} : vector<16x32xf32>, vector<32x128xf32>, vector<16x128xf32> -> vector<16x128xf32>
    %17 = vector.broadcast %8 : vector<1x128xf32> to vector<16x128xf32>
    %18 = arith.addf %16, %17 : vector<16x128xf32>
    %19 = vector.extract_strided_slice %18 {offsets = [0, 0], sizes = [16, 32], strides = [1, 1]} : vector<16x128xf32> to vector<16x32xf32>
    %20 = vector.extract_strided_slice %18 {offsets = [0, 32], sizes = [16, 32], strides = [1, 1]} : vector<16x128xf32> to vector<16x32xf32>
    %21 = vector.extract_strided_slice %18 {offsets = [0, 64], sizes = [16, 32], strides = [1, 1]} : vector<16x128xf32> to vector<16x32xf32>
    %22 = tpu.concatenate %19, %19, %19, %19 in 0 : vector<16x32xf32>, vector<16x32xf32>, vector<16x32xf32>, vector<16x32xf32> -> vector<64x32xf32>
    %23 = arith.mulf %22, %6 : vector<64x32xf32>
    %cst_10 = arith.constant dense<0.000000e+00> : vector<64x16xf32>
    %24 = tpu.matmul %23, %20, %cst_10 {dimension_numbers = #tpu.dot_dimension_numbers<[1], [1], [0], [0], [0, 0, 1, 0], [], []>} : vector<64x32xf32>, vector<16x32xf32>, vector<64x16xf32> -> vector<64x16xf32>
    %25 = arith.addf %24, %1 : vector<64x16xf32>
    %cst_11 = arith.constant dense<0xFF800000> : vector<64xf32>
    %26 = vector.multi_reduction <maximumf>, %25, %cst_11 [1] : vector<64x16xf32> to vector<64xf32>
    %27 = vector.shape_cast %26 : vector<64xf32> to vector<64x1xf32>
    %28 = vector.broadcast %27 : vector<64x1xf32> to vector<64x16xf32>
    %29 = arith.subf %25, %28 : vector<64x16xf32>
    %30 = math.exp %29 : vector<64x16xf32>
    %cst_12 = arith.constant dense<0.000000e+00> : vector<64xf32>
    %31 = vector.multi_reduction <add>, %30, %cst_12 [1] : vector<64x16xf32> to vector<64xf32>
    %32 = vector.shape_cast %31 : vector<64xf32> to vector<64x1xf32>
    %33 = tpu.reciprocal %32 {approx = true} : vector<64x1xf32> -> vector<64x1xf32>
    %34 = vector.broadcast %33 : vector<64x1xf32> to vector<64x16xf32>
    %35 = arith.mulf %30, %34 : vector<64x16xf32>
    %cst_13 = arith.constant dense<0.000000e+00> : vector<64x32xf32>
    %36 = tpu.matmul %35, %21, %cst_13 {dimension_numbers = #tpu.dot_dimension_numbers<[1], [0], [0], [1], [0, 0, 1, 1], [], []>} : vector<64x16xf32>, vector<16x32xf32>, vector<64x32xf32> -> vector<64x32xf32>
    %37 = arith.mulf %36, %6 : vector<64x32xf32>
    %38 = vector.extract_strided_slice %37 {offsets = [0, 0], sizes = [16, 32], strides = [1, 1]} : vector<64x32xf32> to vector<16x32xf32>
    %39 = vector.extract_strided_slice %37 {offsets = [16, 0], sizes = [16, 32], strides = [1, 1]} : vector<64x32xf32> to vector<16x32xf32>
    %40 = arith.addf %38, %39 : vector<16x32xf32>
    %41 = vector.extract_strided_slice %37 {offsets = [32, 0], sizes = [16, 32], strides = [1, 1]} : vector<64x32xf32> to vector<16x32xf32>
    %42 = arith.addf %40, %41 : vector<16x32xf32>
    %43 = vector.extract_strided_slice %37 {offsets = [48, 0], sizes = [16, 32], strides = [1, 1]} : vector<64x32xf32> to vector<16x32xf32>
    %44 = arith.addf %42, %43 : vector<16x32xf32>
    %cst_14 = arith.constant dense<0.000000e+00> : vector<16x32xf32>
    %45 = tpu.matmul %44, %3, %cst_14 {dimension_numbers = #tpu.dot_dimension_numbers<[1], [0], [0], [1], [0, 0, 1, 1], [], []>} : vector<16x32xf32>, vector<32x32xf32>, vector<16x32xf32> -> vector<16x32xf32>
    %46 = vector.broadcast %9 : vector<1x32xf32> to vector<16x32xf32>
    %47 = arith.addf %45, %46 : vector<16x32xf32>
    %48 = arith.addf %0, %47 : vector<16x32xf32>
    %cst_15 = arith.constant dense<0.000000e+00> : vector<16xf32>
    %49 = vector.multi_reduction <add>, %48, %cst_15 [1] : vector<16x32xf32> to vector<16xf32>
    %50 = vector.shape_cast %49 : vector<16xf32> to vector<16x1xf32>
    %cst_16 = arith.constant 3.200000e+01 : f32
    %51 = vector.broadcast %cst_16 : f32 to vector<16x1xf32>
    %52 = arith.divf %50, %51 : vector<16x1xf32>
    %53 = vector.broadcast %52 : vector<16x1xf32> to vector<16x32xf32>
    %54 = arith.subf %48, %53 : vector<16x32xf32>
    %55 = arith.mulf %54, %54 : vector<16x32xf32>
    %cst_17 = arith.constant dense<0.000000e+00> : vector<16xf32>
    %56 = vector.multi_reduction <add>, %55, %cst_17 [1] : vector<16x32xf32> to vector<16xf32>
    %57 = vector.shape_cast %56 : vector<16xf32> to vector<16x1xf32>
    %cst_18 = arith.constant 3.200000e+01 : f32
    %58 = vector.broadcast %cst_18 : f32 to vector<16x1xf32>
    %59 = arith.divf %57, %58 : vector<16x1xf32>
    %60 = vector.broadcast %52 : vector<16x1xf32> to vector<16x32xf32>
    %61 = arith.subf %48, %60 : vector<16x32xf32>
    %cst_19 = arith.constant 9.99999974E-6 : f32
    %62 = vector.broadcast %cst_19 : f32 to vector<16x1xf32>
    %63 = arith.addf %59, %62 : vector<16x1xf32>
    %64 = math.rsqrt %63 : vector<16x1xf32>
    %65 = vector.broadcast %64 : vector<16x1xf32> to vector<16x32xf32>
    %66 = arith.mulf %61, %65 : vector<16x32xf32>
    %67 = vector.broadcast %12 : vector<1x32xf32> to vector<16x32xf32>
    %68 = arith.mulf %66, %67 : vector<16x32xf32>
    %69 = vector.broadcast %13 : vector<1x32xf32> to vector<16x32xf32>
    %70 = arith.addf %68, %69 : vector<16x32xf32>
    %cst_20 = arith.constant dense<0.000000e+00> : vector<16x64xf32>
    %71 = tpu.matmul %70, %4, %cst_20 {dimension_numbers = #tpu.dot_dimension_numbers<[1], [0], [0], [1], [0, 0, 1, 1], [], []>} : vector<16x32xf32>, vector<32x64xf32>, vector<16x64xf32> -> vector<16x64xf32>
    %72 = vector.broadcast %10 : vector<1x64xf32> to vector<16x64xf32>
    %73 = arith.addf %71, %72 : vector<16x64xf32>
    %cst_21 = arith.constant 0.000000e+00 : f32
    %74 = vector.broadcast %cst_21 : f32 to vector<16x64xf32>
    %75 = arith.maximumf %73, %74 : vector<16x64xf32>
    %cst_22 = arith.constant dense<0.000000e+00> : vector<16x32xf32>
    %76 = tpu.matmul %75, %5, %cst_22 {dimension_numbers = #tpu.dot_dimension_numbers<[1], [0], [0], [1], [0, 0, 1, 1], [], []>} : vector<16x64xf32>, vector<64x32xf32>, vector<16x32xf32> -> vector<16x32xf32>
    %77 = vector.broadcast %11 : vector<1x32xf32> to vector<16x32xf32>
    %78 = arith.addf %76, %77 : vector<16x32xf32>
    %79 = arith.addf %70, %78 : vector<16x32xf32>
    %cst_23 = arith.constant dense<0.000000e+00> : vector<16xf32>
    %80 = vector.multi_reduction <add>, %79, %cst_23 [1] : vector<16x32xf32> to vector<16xf32>
    %81 = vector.shape_cast %80 : vector<16xf32> to vector<16x1xf32>
    %cst_24 = arith.constant 3.200000e+01 : f32
    %82 = vector.broadcast %cst_24 : f32 to vector<16x1xf32>
    %83 = arith.divf %81, %82 : vector<16x1xf32>
    %84 = vector.broadcast %83 : vector<16x1xf32> to vector<16x32xf32>
    %85 = arith.subf %79, %84 : vector<16x32xf32>
    %86 = arith.mulf %85, %85 : vector<16x32xf32>
    %cst_25 = arith.constant dense<0.000000e+00> : vector<16xf32>
    %87 = vector.multi_reduction <add>, %86, %cst_25 [1] : vector<16x32xf32> to vector<16xf32>
    %88 = vector.shape_cast %87 : vector<16xf32> to vector<16x1xf32>
    %cst_26 = arith.constant 3.200000e+01 : f32
    %89 = vector.broadcast %cst_26 : f32 to vector<16x1xf32>
    %90 = arith.divf %88, %89 : vector<16x1xf32>
    %91 = vector.broadcast %83 : vector<16x1xf32> to vector<16x32xf32>
    %92 = arith.subf %79, %91 : vector<16x32xf32>
    %cst_27 = arith.constant 9.99999974E-6 : f32
    %93 = vector.broadcast %cst_27 : f32 to vector<16x1xf32>
    %94 = arith.addf %90, %93 : vector<16x1xf32>
    %95 = math.rsqrt %94 : vector<16x1xf32>
    %96 = vector.broadcast %95 : vector<16x1xf32> to vector<16x32xf32>
    %97 = arith.mulf %92, %96 : vector<16x32xf32>
    %98 = vector.broadcast %14 : vector<1x32xf32> to vector<16x32xf32>
    %99 = arith.mulf %97, %98 : vector<16x32xf32>
    %100 = vector.broadcast %15 : vector<1x32xf32> to vector<16x32xf32>
    %101 = arith.addf %99, %100 : vector<16x32xf32>
    %c0_28 = arith.constant 0 : index
    %c0_29 = arith.constant 0 : index
    %102 = vector.load %arg3[%c0_28, %c0_29] : memref<16x32xf32, #tpu.memory_space<vmem>>, vector<16x32xf32>
    tpu.vector_store %arg3[%c0_28, %c0_29], %101 {strides = array<i32>} : memref<16x32xf32, #tpu.memory_space<vmem>>, vector<16x32xf32>,
    return
  }
}

</mosaic_0001>

<llo_original>
// kernel: tpu_custom_call.1
$region0: #{tpu_custom_call.1}
  #allocation0 [shape = 'u32[]', space=smem, size = 0x4, offset = 0x4, fixed_abs, tag = 'smem constant byte address 0x4 - core index']
  #allocation1 [shape = 'u32[144,128]{1,0:T(1,128)}', space=vmem, size = 0x12000, scoped, tag = 'internal scratch']
  %s0 = inlined_call_operand.vmem [shape: f32[16,32], index: 0, kind: input, shape index: {}]
  %s1 = inlined_call_operand.vmem [shape: f32[64,16], index: 1, kind: input, shape index: {}]
  %s2 = inlined_call_operand.hbm [shape: f32[232,128], index: 2, kind: input, shape index: {}]
  %s3 = inlined_call_operand.hbm [shape: f32[16,32], index: 3, kind: output, shape index: {}]
  %s4 = sld [smem:[#allocation0]]
  $region26: #{tpu_custom_call.1} parent=0
    _
  %s6 = ssub.s32 1, %s4
  %s7 = scalar_select 0, %s6, %s4
  $region1: #{tpu_custom_call.1} parent=0
    #allocation2 [shape = 'u8[118784]{0}', space=vmem, size = 0x1d000, scoped, tag = 'input window, operand 2, single buffered']
    #allocation3 [shape = 's32[1]{0}', space=sflag, size = 0x4, scoped, tag = 'scoped memory for tpu_custom_call.1']
    #allocation4 [shape = 's32[1]{0}', space=sflag, size = 0x4, scoped, tag = 'scoped memory for tpu_custom_call.1']
    #allocation5 [shape = 'u8[8192]{0}', space=vmem, size = 0x2000, scoped, tag = 'output window, operand 0, single buffered']
    %8 = vsyncpa [#allocation3], 0
    %9 = vsyncpa [#allocation4], 0
    // Predicated region
    $region2: #{tpu_custom_call.1} parent=1 // pred_check
      _
    $region3: #{tpu_custom_call.1} parent=1 // pred_check_branch
      %11 = sbr.rel (0) target = $region5
    $region4: #{tpu_custom_call.1} parent=1 // pred_region
      _
    $region5: #{tpu_custom_call.1} parent=1 // pred_fallthru
      _
    // Predicated region
    $region6: #{tpu_custom_call.1} parent=1 // pred_check
      _
    $region7: #{tpu_custom_call.1} parent=1 // pred_check_branch
      %13 = sbr.rel (0) target = $region9
    $region8: #{tpu_custom_call.1} parent=1 // pred_region
      _
    $region9: #{tpu_custom_call.1} parent=1 // pred_fallthru
      _
    // Predicated region
    $region10: #{tpu_custom_call.1} parent=1 // pred_check
      _
    $region11: #{tpu_custom_call.1} parent=1 // pred_check_branch
      %15 = sbr.rel (0) target = $region13
    $region12: #{tpu_custom_call.1} parent=1 // pred_region
      %s17 = ssub.s32 3712, 3712
      %18 = vsyncadd [#allocation3], %s17
      %s19 = sshll.u32 [#allocation2], 4
      %s20 = int_to_ptr.vmem [resolvable:$true] %s19
      %25 = dma.hbm_to_vmem [thread:$0]  %s2, 3712, %s20, [#allocation3], 128, 128, 8
    $region13: #{tpu_custom_call.1} parent=1 // pred_fallthru
      _
    // Predicated region
    $region14: #{tpu_custom_call.1} parent=1 // pred_check
      _
    $region15: #{tpu_custom_call.1} parent=1 // pred_check_branch
      %27 = sbr.rel (0) target = $region17
    $region16: #{tpu_custom_call.1} parent=1 // pred_region
      %28 = dma.done [#allocation3], 3712
    $region17: #{tpu_custom_call.1} parent=1 // pred_fallthru
      _
    %v29 = vld [vmem:[%s0] sm:$0xff]
    %v30 = vld [vmem:[%s0 + $0x8] sm:$0xff]
    %v31 = vld [vmem:[%s1] sm:$0xff]
    %v32 = vld [vmem:[%s1 + $0x8] sm:$0xff]
    %v33 = vld [vmem:[%s1 + $0x10] sm:$0xff]
    %v34 = vld [vmem:[%s1 + $0x18] sm:$0xff]
    %v35 = vld [vmem:[%s1 + $0x20] sm:$0xff]
    %v36 = vld [vmem:[%s1 + $0x28] sm:$0xff]
    %v37 = vld [vmem:[%s1 + $0x30] sm:$0xff]
    %v38 = vld [vmem:[%s1 + $0x38] sm:$0xff]
    %v39 = vld [vmem:[#allocation2] sm:$0xff]
    %v40 = vld [vmem:[#allocation2 + $0x8] sm:$0xff]
    %v41 = vld [vmem:[#allocation2 + $0x10] sm:$0xff]
    %v42 = vld [vmem:[#allocation2 + $0x18] sm:$0xff]
    %v43 = vld [vmem:[#allocation2 + $0x20] sm:$0xff]
    %v44 = vld [vmem:[#allocation2 + $0x28] sm:$0xff]
    %v45 = vld [vmem:[#allocation2 + $0x30] sm:$0xff]
    %v46 = vld [vmem:[#allocation2 + $0x38] sm:$0xff]
    %v47 = vld [vmem:[#allocation2 + $0x40] sm:$0xff]
    %v48 = vld [vmem:[#allocation2 + $0x48] sm:$0xff]
    %v49 = vld [vmem:[#allocation2 + $0x50] sm:$0xff]
    %v50 = vld [vmem:[#allocation2 + $0x58] sm:$0xff]
    %v51 = vld [vmem:[#allocation2 + $0x60] sm:$0xff]
    %v52 = vld [vmem:[#allocation2 + $0x68] sm:$0xff]
    %v53 = vld [vmem:[#allocation2 + $0x70] sm:$0xff]
    %v54 = vld [vmem:[#allocation2 + $0x78] sm:$0xff]
    %v55 = vld [vmem:[#allocation2 + $0x80] sm:$0xff]
    %v56 = vld [vmem:[#allocation2 + $0x88] sm:$0xff]
    %v57 = vld [vmem:[#allocation2 + $0x90] sm:$0xff]
    %v58 = vld [vmem:[#allocation2 + $0x98] sm:$0xff]
    %v59 = vld [vmem:[#allocation2 + $0xa0] sm:$0xff]
    %v60 = vld [vmem:[#allocation2 + $0xa8] sm:$0xff]
    %v61 = vld [vmem:[#allocation2 + $0xb0] sm:$0xff]
    %v62 = vld [vmem:[#allocation2 + $0xb8] sm:$0xff]
    %v63 = vld [vmem:[#allocation2 + $0xc0] sm:$0xff]
    %v64 = vld [vmem:[#allocation2 + $0xc8] sm:$0xff]
    %v65 = vld [vmem:[#allocation2 + $0xd0] sm:$0xff]
    %v66 = vld [vmem:[#allocation2 + $0xd8] sm:$0xff]
    %v67 = vld [vmem:[#allocation2 + $0xe0] sm:$0xff]
    %v68 = vlaneseq
    %v69 = vshrl.u32 %v68, 7
    %v70 = vsub.s32 0, %v69
    %v71 = vrot.slane %v67, %v70
    %vm72 = vcmask 261120
    %v74 = vsel %vm72, %v29, 0
    %v77 = vsel %vm72, %v30, 0
    %79 = vmatprep.subr.mxu0 0.0
    %80 = vmatpush1.msra.mxu0 %v39
    %81 = vmatprep.subr.mxu0 0.0
    %82 = vmatpush1.msra.mxu0 %v40
    %83 = vmatprep.subr.mxu0 0.0
    %84 = vmatpush1.msra.mxu0 %v41
    %85 = vmatprep.subr.mxu0 0.0
    %86 = vmatpush1.msra.mxu0 %v42
    %87 = vmatprep.subr.mxu0 0.0
    %88 = vmatpush1.msra.mxu0 0.0
    %89 = vmatprep.subr.mxu0 0.0
    %90 = vmatpush1.msra.mxu0 0.0
    %91 = vmatprep.subr.mxu0 0.0
    %92 = vmatpush1.msra.mxu0 0.0
    %93 = vmatprep.subr.mxu0 0.0
    %94 = vmatpush1.msra.mxu0 0.0
    %95 = vmatprep.subr.mxu0 0.0
    %96 = vmatpush1.msra.mxu0 0.0
    %97 = vmatprep.subr.mxu0 0.0
    %98 = vmatpush1.msra.mxu0 0.0
    %99 = vmatprep.subr.mxu0 0.0
    %100 = vmatpush1.msra.mxu0 0.0
    %101 = vmatprep.subr.mxu0 0.0
    %102 = vmatpush1.msra.mxu0 0.0
    %103 = vmatprep.subr.mxu0 0.0
    %104 = vmatpush1.msra.mxu0 0.0
    %105 = vmatprep.subr.mxu0 0.0
    %106 = vmatpush1.msra.mxu0 0.0
    %107 = vmatprep.subr.mxu0 0.0
    %108 = vmatpush1.msra.mxu0 0.0
    %109 = vmatprep.subr.mxu0 0.0
    %110 = vmatpush1.msra.mxu0 0.0
    %111 = vmatprep.subr.mxu0 0.0
    %112 = vmatpush1.msra.mxu0 0.0
    %113 = vmatprep.subr.mxu0 0.0
    %114 = vmatpush1.msra.mxu0 0.0
    %115 = vmatprep.subr.mxu0 0.0
    %116 = vmatpush1.msra.mxu0 0.0
    %117 = vmatprep.subr.mxu0 0.0
    %118 = vmatpush1.msra.mxu0 0.0
    %119 = vmatprep.subr.mxu0 0.0
    %120 = vmatpush1.msra.mxu0 0.0
    %121 = vmatprep.subr.mxu0 0.0
    %122 = vmatpush1.msra.mxu0 0.0
    %123 = vmatprep.subr.mxu0 0.0
    %124 = vmatpush1.msra.mxu0 0.0
    %125 = vmatprep.subr.mxu0 0.0
    %126 = vmatpush1.msra.mxu0 0.0
    %127 = vmatprep.subr.mxu0 0.0
    %128 = vmatpush1.msra.mxu0 0.0
    %129 = vmatprep.subr.mxu0 0.0
    %130 = vmatpush1.msra.mxu0 0.0
    %131 = vmatprep.subr.mxu0 0.0
    %132 = vmatpush1.msra.mxu0 0.0
    %133 = vmatprep.subr.mxu0 0.0
    %134 = vmatpush1.msra.mxu0 0.0
    %135 = vmatprep.subr.mxu0 0.0
    %136 = vmatpush1.msra.mxu0 0.0
    %137 = vmatprep.subr.mxu0 0.0
    %138 = vmatpush1.msra.mxu0 0.0
    %139 = vmatprep.subr.mxu0 0.0
    %140 = vmatpush1.msra.mxu0 0.0
    %141 = vmatprep.subr.mxu0 0.0
    %142 = vmatpush1.msra.mxu0 0.0
    %143 = vmatprep.mubr.f32.mxu0 0.0
    %144 = vmatmul.mubr.f32.gmra.mrb[0].mxu0 %v74
    %v145 = vpop.f32.mrb[0].mxu0
    %v146 = vadd.f32 %v71, %v145
    %v147 = vpop.f32.mrb[0].mxu0
    %148 = vmatprep.mubr.f32.mxu0 0.0
    %149 = vmatmul.mubr.f32.gmra.mrb[0].mxu0 %v77
    %v150 = vpop.f32.mrb[0].mxu0
    %v151 = vadd.f32 %v71, %v150
    %v152 = vpop.f32.mrb[0].mxu0
    %153 = vdwg.mxu0
    %v154 = vmul.f32 %v146, %v59
    %v155 = vmul.f32 %v151, %v60
    %v156 = vmul.f32 %v146, %v61
    %v157 = vmul.f32 %v151, %v62
    %v158 = vmul.f32 %v146, %v63
    %v159 = vmul.f32 %v151, %v64
    %v160 = vmul.f32 %v146, %v65
    %v161 = vmul.f32 %v151, %v66
    %164 = vrot.lane.b32.xlu0 %v146, 96
    %v165 = vpop.permute.xlu0 %164
    %166 = vrot.lane.b32.xlu0 %v151, 96
    %v167 = vpop.permute.xlu0 %166
    %v169 = vsel %vm72, %v154, 0
    %v172 = vsel %vm72, %v155, 0
    %v175 = vsel %vm72, %v156, 0
    %v178 = vsel %vm72, %v157, 0
    %v181 = vsel %vm72, %v158, 0
    %v184 = vsel %vm72, %v159, 0
    %v187 = vsel %vm72, %v160, 0
    %v190 = vsel %vm72, %v161, 0
    %v192 = vsel %vm72, %v165, 0
    %v194 = vsel %vm72, %v167, 0
    %196 = vmatprep.subr.mxu0 0.0
    %197 = vmatpush1.xpose.msra.mxu0 %v192
    %198 = vmatprep.subr.mxu0 0.0
    %199 = vmatpush1.xpose.msra.mxu0 %v194
    %200 = vmatprep.subr.mxu0 0.0
    %201 = vmatpush1.xpose.msra.mxu0 0.0
    %202 = vmatprep.subr.mxu0 0.0
    %203 = vmatpush1.xpose.msra.mxu0 0.0
    %204 = vmatprep.subr.mxu0 0.0
    %205 = vmatpush1.xpose.msra.mxu0 0.0
    %206 = vmatprep.subr.mxu0 0.0
    %207 = vmatpush1.xpose.msra.mxu0 0.0
    %208 = vmatprep.subr.mxu0 0.0
    %209 = vmatpush1.xpose.msra.mxu0 0.0
    %210 = vmatprep.subr.mxu0 0.0
    %211 = vmatpush1.xpose.msra.mxu0 0.0
    %212 = vmatprep.subr.mxu0 0.0
    %213 = vmatpush1.xpose.msra.mxu0 0.0
    %214 = vmatprep.subr.mxu0 0.0
    %215 = vmatpush1.xpose.msra.mxu0 0.0
    %216 = vmatprep.subr.mxu0 0.0
    %217 = vmatpush1.xpose.msra.mxu0 0.0
    %218 = vmatprep.subr.mxu0 0.0
    %219 = vmatpush1.xpose.msra.mxu0 0.0
    %220 = vmatprep.subr.mxu0 0.0
    %221 = vmatpush1.xpose.msra.mxu0 0.0
    %222 = vmatprep.subr.mxu0 0.0
    %223 = vmatpush1.xpose.msra.mxu0 0.0
    %224 = vmatprep.subr.mxu0 0.0
    %225 = vmatpush1.xpose.msra.mxu0 0.0
    %226 = vmatprep.subr.mxu0 0.0
    %227 = vmatpush1.xpose.msra.mxu0 0.0
    %228 = vmatprep.subr.mxu0 0.0
    %229 = vmatpush1.xpose.msra.mxu0 0.0
    %230 = vmatprep.subr.mxu0 0.0
    %231 = vmatpush1.xpose.msra.mxu0 0.0
    %232 = vmatprep.subr.mxu0 0.0
    %233 = vmatpush1.xpose.msra.mxu0 0.0
    %234 = vmatprep.subr.mxu0 0.0
    %235 = vmatpush1.xpose.msra.mxu0 0.0
    %236 = vmatprep.subr.mxu0 0.0
    %237 = vmatpush1.xpose.msra.mxu0 0.0
    %238 = vmatprep.subr.mxu0 0.0
    %239 = vmatpush1.xpose.msra.mxu0 0.0
    %240 = vmatprep.subr.mxu0 0.0
    %241 = vmatpush1.xpose.msra.mxu0 0.0
    %242 = vmatprep.subr.mxu0 0.0
    %243 = vmatpush1.xpose.msra.mxu0 0.0
    %244 = vmatprep.subr.mxu0 0.0
    %245 = vmatpush1.xpose.msra.mxu0 0.0
    %246 = vmatprep.subr.mxu0 0.0
    %247 = vmatpush1.xpose.msra.mxu0 0.0
    %248 = vmatprep.subr.mxu0 0.0
    %249 = vmatpush1.xpose.msra.mxu0 0.0
    %250 = vmatprep.subr.mxu0 0.0
    %251 = vmatpush1.xpose.msra.mxu0 0.0
    %252 = vmatprep.subr.mxu0 0.0
    %253 = vmatpush1.xpose.msra.mxu0 0.0
    %254 = vmatprep.subr.mxu0 0.0
    %255 = vmatpush1.xpose.msra.mxu0 0.0
    %256 = vmatprep.subr.mxu0 0.0
    %257 = vmatpush1.xpose.msra.mxu0 0.0
    %258 = vmatprep.subr.mxu0 0.0
    %259 = vmatpush1.xpose.msra.mxu0 0.0
    %260 = vmatprep.mubr.f32.mxu0 0.0
    %261 = vmatmul.mubr.f32.gmra.mrb[0].mxu0 %v169
    %v262 = vpop.f32.mrb[0].mxu0
    %v263 = vadd.f32 %v31, %v262
    %v264 = vpop.f32.mrb[0].mxu0
    %265 = vmatprep.mubr.f32.mxu0 0.0
    %266 = vmatmul.mubr.f32.gmra.mrb[0].mxu0 %v172
    %v267 = vpop.f32.mrb[0].mxu0
    %v268 = vadd.f32 %v32, %v267
    %v269 = vpop.f32.mrb[0].mxu0
    %270 = vmatprep.mubr.f32.mxu0 0.0
    %271 = vmatmul.mubr.f32.gmra.mrb[0].mxu0 %v175
    %v272 = vpop.f32.mrb[0].mxu0
    %v273 = vadd.f32 %v33, %v272
    %v274 = vpop.f32.mrb[0].mxu0
    %275 = vmatprep.mubr.f32.mxu0 0.0
    %276 = vmatmul.mubr.f32.gmra.mrb[0].mxu0 %v178
    %v277 = vpop.f32.mrb[0].mxu0
    %v278 = vadd.f32 %v34, %v277
    %v279 = vpop.f32.mrb[0].mxu0
    %280 = vmatprep.mubr.f32.mxu0 0.0
    %281 = vmatmul.mubr.f32.gmra.mrb[0].mxu0 %v181
    %v282 = vpop.f32.mrb[0].mxu0
    %v283 = vadd.f32 %v35, %v282
    %v284 = vpop.f32.mrb[0].mxu0
    %285 = vmatprep.mubr.f32.mxu0 0.0
    %286 = vmatmul.mubr.f32.gmra.mrb[0].mxu0 %v184
    %v287 = vpop.f32.mrb[0].mxu0
    %v288 = vadd.f32 %v36, %v287
    %v289 = vpop.f32.mrb[0].mxu0
    %290 = vmatprep.mubr.f32.mxu0 0.0
    %291 = vmatmul.mubr.f32.gmra.mrb[0].mxu0 %v187
    %v292 = vpop.f32.mrb[0].mxu0
    %v293 = vadd.f32 %v37, %v292
    %v294 = vpop.f32.mrb[0].mxu0
    %295 = vmatprep.mubr.f32.mxu0 0.0
    %296 = vmatmul.mubr.f32.gmra.mrb[0].mxu0 %v190
    %v297 = vpop.f32.mrb[0].mxu0
    %v298 = vadd.f32 %v38, %v297
    %v299 = vpop.f32.mrb[0].mxu0
    %300 = vdwg.mxu0
    %vm301 = vcmask 130048
    %v302 = vsel %vm301, %v263, -inf
    %303 = vmax.xlane.f32.xlu0 %v302
    %v304 = vpop.xlane.xlu0 %303
    %v305 = vsel %vm301, %v268, -inf
    %306 = vmax.xlane.f32.xlu0 %v305
    %v307 = vpop.xlane.xlu0 %306
    %v308 = vsel %vm301, %v273, -inf
    %309 = vmax.xlane.f32.xlu0 %v308
    %v310 = vpop.xlane.xlu0 %309
    %v311 = vsel %vm301, %v278, -inf
    %312 = vmax.xlane.f32.xlu0 %v311
    %v313 = vpop.xlane.xlu0 %312
    %v314 = vsel %vm301, %v283, -inf
    %315 = vmax.xlane.f32.xlu0 %v314
    %v316 = vpop.xlane.xlu0 %315
    %v317 = vsel %vm301, %v288, -inf
    %318 = vmax.xlane.f32.xlu0 %v317
    %v319 = vpop.xlane.xlu0 %318
    %v320 = vsel %vm301, %v293, -inf
    %321 = vmax.xlane.f32.xlu0 %v320
    %v322 = vpop.xlane.xlu0 %321
    %v323 = vsel %vm301, %v298, -inf
    %324 = vmax.xlane.f32.xlu0 %v323
    %v325 = vpop.xlane.xlu0 %324
    %v326 = vsub.f32 %v263, %v304
    %v327 = vsub.f32 %v268, %v307
    %v328 = vsub.f32 %v273, %v310
    %v329 = vsub.f32 %v278, %v313
    %v330 = vsub.f32 %v283, %v316
    %v331 = vsub.f32 %v288, %v319
    %v332 = vsub.f32 %v293, %v322
    %v333 = vsub.f32 %v298, %v325
    %v334 = vmul.f32 %v326, 1.442695
    %v335 = vpow.pop %v334
    %v336 = vmul.f32 %v327, 1.442695
    %v337 = vpow.pop %v336
    %v338 = vmul.f32 %v328, 1.442695
    %v339 = vpow.pop %v338
    %v340 = vmul.f32 %v329, 1.442695
    %v341 = vpow.pop %v340
    %v342 = vmul.f32 %v330, 1.442695
    %v343 = vpow.pop %v342
    %v344 = vmul.f32 %v331, 1.442695
    %v345 = vpow.pop %v344
    %v346 = vmul.f32 %v332, 1.442695
    %v347 = vpow.pop %v346
    %v348 = vmul.f32 %v333, 1.442695
    %v349 = vpow.pop %v348
    %v350 = vsel %vm301, %v335, 0.0
    %351 = vadd.xlane.f32.xlu0 %v350
    %v352 = vpop.xlane.xlu0 %351
    %v353 = vsel %vm301, %v337, 0.0
    %354 = vadd.xlane.f32.xlu0 %v353
    %v355 = vpop.xlane.xlu0 %354
    %v356 = vsel %vm301, %v339, 0.0
    %357 = vadd.xlane.f32.xlu0 %v356
    %v358 = vpop.xlane.xlu0 %357
    %v359 = vsel %vm301, %v341, 0.0
    %360 = vadd.xlane.f32.xlu0 %v359
    %v361 = vpop.xlane.xlu0 %360
    %v362 = vsel %vm301, %v343, 0.0
    %363 = vadd.xlane.f32.xlu0 %v362
    %v364 = vpop.xlane.xlu0 %363
    %v365 = vsel %vm301, %v345, 0.0
    %366 = vadd.xlane.f32.xlu0 %v365
    %v367 = vpop.xlane.xlu0 %366
    %v368 = vsel %vm301, %v347, 0.0
    %369 = vadd.xlane.f32.xlu0 %v368
    %v370 = vpop.xlane.xlu0 %369
    %v371 = vsel %vm301, %v349, 0.0
    %372 = vadd.xlane.f32.xlu0 %v371
    %v373 = vpop.xlane.xlu0 %372
    %v374 = vrcp.pop %v352
    %v375 = vrcp.pop %v355
    %v376 = vrcp.pop %v358
    %v377 = vrcp.pop %v361
    %v378 = vrcp.pop %v364
    %v379 = vrcp.pop %v367
    %v380 = vrcp.pop %v370
    %v381 = vrcp.pop %v373
    %v382 = vmul.f32 %v335, %v374
    %v383 = vmul.f32 %v337, %v375
    %v384 = vmul.f32 %v339, %v376
    %v385 = vmul.f32 %v341, %v377
    %v386 = vmul.f32 %v343, %v378
    %v387 = vmul.f32 %v345, %v379
    %v388 = vmul.f32 %v347, %v380
    %v389 = vmul.f32 %v349, %v381
    %390 = vrot.lane.b32.xlu0 %v146, 64
    %v391 = vpop.permute.xlu0 %390
    %392 = vrot.lane.b32.xlu0 %v151, 64
    %v393 = vpop.permute.xlu0 %392
    %v397 = vsel %vm301, %v382, 0
    %v400 = vsel %vm301, %v383, 0
    %v403 = vsel %vm301, %v384, 0
    %v406 = vsel %vm301, %v385, 0
    %v409 = vsel %vm301, %v386, 0
    %v412 = vsel %vm301, %v387, 0
    %v415 = vsel %vm301, %v388, 0
    %v418 = vsel %vm301, %v389, 0
    %420 = vmatprep.subr.mxu0 0.0
    %421 = vmatpush1.msra.mxu0 %v391
    %422 = vmatprep.subr.mxu0 0.0
    %423 = vmatpush1.msra.mxu0 %v393
    %424 = vmatprep.subr.mxu0 0.0
    %425 = vmatpush1.msra.mxu0 0.0
    %426 = vmatprep.subr.mxu0 0.0
    %427 = vmatpush1.msra.mxu0 0.0
    %428 = vmatprep.subr.mxu0 0.0
    %429 = vmatpush1.msra.mxu0 0.0
    %430 = vmatprep.subr.mxu0 0.0
    %431 = vmatpush1.msra.mxu0 0.0
    %432 = vmatprep.subr.mxu0 0.0
    %433 = vmatpush1.msra.mxu0 0.0
    %434 = vmatprep.subr.mxu0 0.0
    %435 = vmatpush1.msra.mxu0 0.0
    %436 = vmatprep.subr.mxu0 0.0
    %437 = vmatpush1.msra.mxu0 0.0
    %438 = vmatprep.subr.mxu0 0.0
    %439 = vmatpush1.msra.mxu0 0.0
    %440 = vmatprep.subr.mxu0 0.0
    %441 = vmatpush1.msra.mxu0 0.0
    %442 = vmatprep.subr.mxu0 0.0
    %443 = vmatpush1.msra.mxu0 0.0
    %444 = vmatprep.subr.mxu0 0.0
    %445 = vmatpush1.msra.mxu0 0.0
    %446 = vmatprep.subr.mxu0 0.0
    %447 = vmatpush1.msra.mxu0 0.0
    %448 = vmatprep.subr.mxu0 0.0
    %449 = vmatpush1.msra.mxu0 0.0
    %450 = vmatprep.subr.mxu0 0.0
    %451 = vmatpush1.msra.mxu0 0.0
    %452 = vmatprep.subr.mxu0 0.0
    %453 = vmatpush1.msra.mxu0 0.0
    %454 = vmatprep.subr.mxu0 0.0
    %455 = vmatpush1.msra.mxu0 0.0
    %456 = vmatprep.subr.mxu0 0.0
    %457 = vmatpush1.msra.mxu0 0.0
    %458 = vmatprep.subr.mxu0 0.0
    %459 = vmatpush1.msra.mxu0 0.0
    %460 = vmatprep.subr.mxu0 0.0
    %461 = vmatpush1.msra.mxu0 0.0
    %462 = vmatprep.subr.mxu0 0.0
    %463 = vmatpush1.msra.mxu0 0.0
    %464 = vmatprep.subr.mxu0 0.0
    %465 = vmatpush1.msra.mxu0 0.0
    %466 = vmatprep.subr.mxu0 0.0
    %467 = vmatpush1.msra.mxu0 0.0
    %468 = vmatprep.subr.mxu0 0.0
    %469 = vmatpush1.msra.mxu0 0.0
    %470 = vmatprep.subr.mxu0 0.0
    %471 = vmatpush1.msra.mxu0 0.0
    %472 = vmatprep.subr.mxu0 0.0
    %473 = vmatpush1.msra.mxu0 0.0
    %474 = vmatprep.subr.mxu0 0.0
    %475 = vmatpush1.msra.mxu0 0.0
    %476 = vmatprep.subr.mxu0 0.0
    %477 = vmatpush1.msra.mxu0 0.0
    %478 = vmatprep.subr.mxu0 0.0
    %479 = vmatpush1.msra.mxu0 0.0
    %480 = vmatprep.subr.mxu0 0.0
    %481 = vmatpush1.msra.mxu0 0.0
    %482 = vmatprep.subr.mxu0 0.0
    %483 = vmatpush1.msra.mxu0 0.0
    %484 = vmatprep.mubr.f32.mxu0 0.0
    %485 = vmatmul.mubr.f32.gmra.mrb[0].mxu0 %v397
    %v486 = vpop.f32.mrb[0].mxu0
    %v487 = vadd.f32 0.0, %v486
    %v488 = vpop.f32.mrb[0].mxu0
    %489 = vmatprep.mubr.f32.mxu0 0.0
    %490 = vmatmul.mubr.f32.gmra.mrb[0].mxu0 %v400
    %v491 = vpop.f32.mrb[0].mxu0
    %v492 = vadd.f32 0.0, %v491
    %v493 = vpop.f32.mrb[0].mxu0
    %494 = vmatprep.mubr.f32.mxu0 0.0
    %495 = vmatmul.mubr.f32.gmra.mrb[0].mxu0 %v403
    %v496 = vpop.f32.mrb[0].mxu0
    %v497 = vadd.f32 0.0, %v496
    %v498 = vpop.f32.mrb[0].mxu0
    %499 = vmatprep.mubr.f32.mxu0 0.0
    %500 = vmatmul.mubr.f32.gmra.mrb[0].mxu0 %v406
    %v501 = vpop.f32.mrb[0].mxu0
    %v502 = vadd.f32 0.0, %v501
    %v503 = vpop.f32.mrb[0].mxu0
    %504 = vmatprep.mubr.f32.mxu0 0.0
    %505 = vmatmul.mubr.f32.gmra.mrb[0].mxu0 %v409
    %v506 = vpop.f32.mrb[0].mxu0
    %v507 = vadd.f32 0.0, %v506
    %v508 = vpop.f32.mrb[0].mxu0
    %509 = vmatprep.mubr.f32.mxu0 0.0
    %510 = vmatmul.mubr.f32.gmra.mrb[0].mxu0 %v412
    %v511 = vpop.f32.mrb[0].mxu0
    %v512 = vadd.f32 0.0, %v511
    %v513 = vpop.f32.mrb[0].mxu0
    %514 = vmatprep.mubr.f32.mxu0 0.0
    %515 = vmatmul.mubr.f32.gmra.mrb[0].mxu0 %v415
    %v516 = vpop.f32.mrb[0].mxu0
    %v517 = vadd.f32 0.0, %v516
    %v518 = vpop.f32.mrb[0].mxu0
    %519 = vmatprep.mubr.f32.mxu0 0.0
    %520 = vmatmul.mubr.f32.gmra.mrb[0].mxu0 %v418
    %v521 = vpop.f32.mrb[0].mxu0
    %v522 = vadd.f32 0.0, %v521
    %v523 = vpop.f32.mrb[0].mxu0
    %524 = vdwg.mxu0
    %v525 = vmul.f32 %v487, %v59
    %v526 = vmul.f32 %v492, %v60
    %v527 = vmul.f32 %v497, %v61
    %v528 = vmul.f32 %v502, %v62
    %v529 = vmul.f32 %v507, %v63
    %v530 = vmul.f32 %v512, %v64
    %v531 = vmul.f32 %v517, %v65
    %v532 = vmul.f32 %v522, %v66
    %v533 = vadd.f32 %v525, %v527
    %v534 = vadd.f32 %v526, %v528
    %v535 = vadd.f32 %v533, %v529
    %v536 = vadd.f32 %v534, %v530
    %v537 = vadd.f32 %v535, %v531
    %v538 = vadd.f32 %v536, %v532
    %v539 = vlaneseq
    %v540 = vshrl.u32 %v539, 7
    %v541 = vsub.s32 1, %v540
    %v542 = vrot.slane %v67, %v541
    %v544 = vsel %vm72, %v537, 0
    %v547 = vsel %vm72, %v538, 0
    %549 = vmatprep.subr.mxu0 0.0
    %550 = vmatpush1.msra.mxu0 %v43
    %551 = vmatprep.subr.mxu0 0.0
    %552 = vmatpush1.msra.mxu0 %v44
    %553 = vmatprep.subr.mxu0 0.0
    %554 = vmatpush1.msra.mxu0 %v45
    %555 = vmatprep.subr.mxu0 0.0
    %556 = vmatpush1.msra.mxu0 %v46
    %557 = vmatprep.subr.mxu0 0.0
    %558 = vmatpush1.msra.mxu0 0.0
    %559 = vmatprep.subr.mxu0 0.0
    %560 = vmatpush1.msra.mxu0 0.0
    %561 = vmatprep.subr.mxu0 0.0
    %562 = vmatpush1.msra.mxu0 0.0
    %563 = vmatprep.subr.mxu0 0.0
    %564 = vmatpush1.msra.mxu0 0.0
    %565 = vmatprep.subr.mxu0 0.0
    %566 = vmatpush1.msra.mxu0 0.0
    %567 = vmatprep.subr.mxu0 0.0
    %568 = vmatpush1.msra.mxu0 0.0
    %569 = vmatprep.subr.mxu0 0.0
    %570 = vmatpush1.msra.mxu0 0.0
    %571 = vmatprep.subr.mxu0 0.0
    %572 = vmatpush1.msra.mxu0 0.0
    %573 = vmatprep.subr.mxu0 0.0
    %574 = vmatpush1.msra.mxu0 0.0
    %575 = vmatprep.subr.mxu0 0.0
    %576 = vmatpush1.msra.mxu0 0.0
    %577 = vmatprep.subr.mxu0 0.0
    %578 = vmatpush1.msra.mxu0 0.0
    %579 = vmatprep.subr.mxu0 0.0
    %580 = vmatpush1.msra.mxu0 0.0
    %581 = vmatprep.subr.mxu0 0.0
    %582 = vmatpush1.msra.mxu0 0.0
    %583 = vmatprep.subr.mxu0 0.0
    %584 = vmatpush1.msra.mxu0 0.0
    %585 = vmatprep.subr.mxu0 0.0
    %586 = vmatpush1.msra.mxu0 0.0
    %587 = vmatprep.subr.mxu0 0.0
    %588 = vmatpush1.msra.mxu0 0.0
    %589 = vmatprep.subr.mxu0 0.0
    %590 = vmatpush1.msra.mxu0 0.0
    %591 = vmatprep.subr.mxu0 0.0
    %592 = vmatpush1.msra.mxu0 0.0
    %593 = vmatprep.subr.mxu0 0.0
    %594 = vmatpush1.msra.mxu0 0.0
    %595 = vmatprep.subr.mxu0 0.0
    %596 = vmatpush1.msra.mxu0 0.0
    %597 = vmatprep.subr.mxu0 0.0
    %598 = vmatpush1.msra.mxu0 0.0
    %599 = vmatprep.subr.mxu0 0.0
    %600 = vmatpush1.msra.mxu0 0.0
    %601 = vmatprep.subr.mxu0 0.0
    %602 = vmatpush1.msra.mxu0 0.0
    %603 = vmatprep.subr.mxu0 0.0
    %604 = vmatpush1.msra.mxu0 0.0
    %605 = vmatprep.subr.mxu0 0.0
    %606 = vmatpush1.msra.mxu0 0.0
    %607 = vmatprep.subr.mxu0 0.0
    %608 = vmatpush1.msra.mxu0 0.0
    %609 = vmatprep.subr.mxu0 0.0
    %610 = vmatpush1.msra.mxu0 0.0
    %611 = vmatprep.subr.mxu0 0.0
    %612 = vmatpush1.msra.mxu0 0.0
    %613 = vmatprep.mubr.f32.mxu0 0.0
    %614 = vmatmul.mubr.f32.gmra.mrb[0].mxu0 %v544
    %v615 = vpop.f32.mrb[0].mxu0
    %v616 = vadd.f32 %v542, %v615
    %v617 = vpop.f32.mrb[0].mxu0
    %618 = vmatprep.mubr.f32.mxu0 0.0
    %619 = vmatmul.mubr.f32.gmra.mrb[0].mxu0 %v547
    %v620 = vpop.f32.mrb[0].mxu0
    %v621 = vadd.f32 %v542, %v620
    %v622 = vpop.f32.mrb[0].mxu0
    %623 = vdwg.mxu0
    %v624 = vadd.f32 %v29, %v616
    %v625 = vadd.f32 %v30, %v621
    %v626 = vsel %vm72, %v624, 0.0
    %627 = vadd.xlane.f32.xlu0 %v626
    %v628 = vpop.xlane.xlu0 %627
    %v629 = vsel %vm72, %v625, 0.0
    %630 = vadd.xlane.f32.xlu0 %v629
    %v631 = vpop.xlane.xlu0 %630
    %v632 = vrcp.pop 32.0
    %v633 = vmul.f32 %v628, %v632
    %v634 = vmul.f32 %v631, %v632
    %v635 = vsub.f32 %v624, %v633
    %v636 = vsub.f32 %v625, %v634
    %v637 = vmul.f32 %v635, %v635
    %v638 = vmul.f32 %v636, %v636
    %v639 = vsel %vm72, %v637, 0.0
    %640 = vadd.xlane.f32.xlu0 %v639
    %v641 = vpop.xlane.xlu0 %640
    %v642 = vsel %vm72, %v638, 0.0
    %643 = vadd.xlane.f32.xlu0 %v642
    %v644 = vpop.xlane.xlu0 %643
    %v645 = vmul.f32 %v641, %v632
    %v646 = vmul.f32 %v644, %v632
    %v647 = vadd.f32 %v645, 1e-05
    %v648 = vadd.f32 %v646, 1e-05
    %v649 = vrsqrt.pop %v647
    %v650 = vrsqrt.pop %v648
    %v651 = vmul.f32 %v635, %v649
    %v652 = vmul.f32 %v636, %v650
    %v653 = vlaneseq
    %v654 = vshrl.u32 %v653, 7
    %v655 = vsub.s32 4, %v654
    %v656 = vrot.slane %v67, %v655
    %v657 = vmul.f32 %v651, %v656
    %v658 = vmul.f32 %v652, %v656
    %v659 = vlaneseq
    %v660 = vshrl.u32 %v659, 7
    %v661 = vsub.s32 5, %v660
    %v662 = vrot.slane %v67, %v661
    %v663 = vadd.f32 %v657, %v662
    %v664 = vadd.f32 %v658, %v662
    %v665 = vlaneseq
    %v666 = vshrl.u32 %v665, 7
    %v667 = vsub.s32 2, %v666
    %v668 = vrot.slane %v67, %v667
    %v670 = vsel %vm72, %v663, 0
    %v673 = vsel %vm72, %v664, 0
    %675 = vmatprep.subr.mxu0 0.0
    %676 = vmatpush1.msra.mxu0 %v47
    %677 = vmatprep.subr.mxu0 0.0
    %678 = vmatpush1.msra.mxu0 %v48
    %679 = vmatprep.subr.mxu0 0.0
    %680 = vmatpush1.msra.mxu0 %v49
    %681 = vmatprep.subr.mxu0 0.0
    %682 = vmatpush1.msra.mxu0 %v50
    %683 = vmatprep.subr.mxu0 0.0
    %684 = vmatpush1.msra.mxu0 0.0
    %685 = vmatprep.subr.mxu0 0.0
    %686 = vmatpush1.msra.mxu0 0.0
    %687 = vmatprep.subr.mxu0 0.0
    %688 = vmatpush1.msra.mxu0 0.0
    %689 = vmatprep.subr.mxu0 0.0
    %690 = vmatpush1.msra.mxu0 0.0
    %691 = vmatprep.subr.mxu0 0.0
    %692 = vmatpush1.msra.mxu0 0.0
    %693 = vmatprep.subr.mxu0 0.0
    %694 = vmatpush1.msra.mxu0 0.0
    %695 = vmatprep.subr.mxu0 0.0
    %696 = vmatpush1.msra.mxu0 0.0
    %697 = vmatprep.subr.mxu0 0.0
    %698 = vmatpush1.msra.mxu0 0.0
    %699 = vmatprep.subr.mxu0 0.0
    %700 = vmatpush1.msra.mxu0 0.0
    %701 = vmatprep.subr.mxu0 0.0
    %702 = vmatpush1.msra.mxu0 0.0
    %703 = vmatprep.subr.mxu0 0.0
    %704 = vmatpush1.msra.mxu0 0.0
    %705 = vmatprep.subr.mxu0 0.0
    %706 = vmatpush1.msra.mxu0 0.0
    %707 = vmatprep.subr.mxu0 0.0
    %708 = vmatpush1.msra.mxu0 0.0
    %709 = vmatprep.subr.mxu0 0.0
    %710 = vmatpush1.msra.mxu0 0.0
    %711 = vmatprep.subr.mxu0 0.0
    %712 = vmatpush1.msra.mxu0 0.0
    %713 = vmatprep.subr.mxu0 0.0
    %714 = vmatpush1.msra.mxu0 0.0
    %715 = vmatprep.subr.mxu0 0.0
    %716 = vmatpush1.msra.mxu0 0.0
    %717 = vmatprep.subr.mxu0 0.0
    %718 = vmatpush1.msra.mxu0 0.0
    %719 = vmatprep.subr.mxu0 0.0
    %720 = vmatpush1.msra.mxu0 0.0
    %721 = vmatprep.subr.mxu0 0.0
    %722 = vmatpush1.msra.mxu0 0.0
    %723 = vmatprep.subr.mxu0 0.0
    %724 = vmatpush1.msra.mxu0 0.0
    %725 = vmatprep.subr.mxu0 0.0
    %726 = vmatpush1.msra.mxu0 0.0
    %727 = vmatprep.subr.mxu0 0.0
    %728 = vmatpush1.msra.mxu0 0.0
    %729 = vmatprep.subr.mxu0 0.0
    %730 = vmatpush1.msra.mxu0 0.0
    %731 = vmatprep.subr.mxu0 0.0
    %732 = vmatpush1.msra.mxu0 0.0
    %733 = vmatprep.subr.mxu0 0.0
    %734 = vmatpush1.msra.mxu0 0.0
    %735 = vmatprep.subr.mxu0 0.0
    %736 = vmatpush1.msra.mxu0 0.0
    %737 = vmatprep.subr.mxu0 0.0
    %738 = vmatpush1.msra.mxu0 0.0
    %739 = vmatprep.mubr.f32.mxu0 0.0
    %740 = vmatmul.mubr.f32.gmra.mrb[0].mxu0 %v670
    %v741 = vpop.f32.mrb[0].mxu0
    %v742 = vadd.f32 %v668, %v741
    %v743 = vpop.f32.mrb[0].mxu0
    %744 = vmatprep.mubr.f32.mxu0 0.0
    %745 = vmatmul.mubr.f32.gmra.mrb[0].mxu0 %v673
    %v746 = vpop.f32.mrb[0].mxu0
    %v747 = vadd.f32 %v668, %v746
    %v748 = vpop.f32.mrb[0].mxu0
    %749 = vdwg.mxu0
    %v750 = vmax.f32 %v742, 0.0
    %v751 = vmax.f32 %v747, 0.0
    %v752 = vlaneseq
    %v753 = vshrl.u32 %v752, 7
    %v754 = vsub.s32 3, %v753
    %v755 = vrot.slane %v67, %v754
    %vm756 = vcmask 523264
    %v758 = vsel %vm756, %v750, 0
    %v761 = vsel %vm756, %v751, 0
    %763 = vmatprep.subr.mxu0 0.0
    %764 = vmatpush1.msra.mxu0 %v51
    %765 = vmatprep.subr.mxu0 0.0
    %766 = vmatpush1.msra.mxu0 %v52
    %767 = vmatprep.subr.mxu0 0.0
    %768 = vmatpush1.msra.mxu0 %v53
    %769 = vmatprep.subr.mxu0 0.0
    %770 = vmatpush1.msra.mxu0 %v54
    %771 = vmatprep.subr.mxu0 0.0
    %772 = vmatpush1.msra.mxu0 %v55
    %773 = vmatprep.subr.mxu0 0.0
    %774 = vmatpush1.msra.mxu0 %v56
    %775 = vmatprep.subr.mxu0 0.0
    %776 = vmatpush1.msra.mxu0 %v57
    %777 = vmatprep.subr.mxu0 0.0
    %778 = vmatpush1.msra.mxu0 %v58
    %779 = vmatprep.subr.mxu0 0.0
    %780 = vmatpush1.msra.mxu0 0.0
    %781 = vmatprep.subr.mxu0 0.0
    %782 = vmatpush1.msra.mxu0 0.0
    %783 = vmatprep.subr.mxu0 0.0
    %784 = vmatpush1.msra.mxu0 0.0
    %785 = vmatprep.subr.mxu0 0.0
    %786 = vmatpush1.msra.mxu0 0.0
    %787 = vmatprep.subr.mxu0 0.0
    %788 = vmatpush1.msra.mxu0 0.0
    %789 = vmatprep.subr.mxu0 0.0
    %790 = vmatpush1.msra.mxu0 0.0
    %791 = vmatprep.subr.mxu0 0.0
    %792 = vmatpush1.msra.mxu0 0.0
    %793 = vmatprep.subr.mxu0 0.0
    %794 = vmatpush1.msra.mxu0 0.0
    %795 = vmatprep.subr.mxu0 0.0
    %796 = vmatpush1.msra.mxu0 0.0
    %797 = vmatprep.subr.mxu0 0.0
    %798 = vmatpush1.msra.mxu0 0.0
    %799 = vmatprep.subr.mxu0 0.0
    %800 = vmatpush1.msra.mxu0 0.0
    %801 = vmatprep.subr.mxu0 0.0
    %802 = vmatpush1.msra.mxu0 0.0
    %803 = vmatprep.subr.mxu0 0.0
    %804 = vmatpush1.msra.mxu0 0.0
    %805 = vmatprep.subr.mxu0 0.0
    %806 = vmatpush1.msra.mxu0 0.0
    %807 = vmatprep.subr.mxu0 0.0
    %808 = vmatpush1.msra.mxu0 0.0
    %809 = vmatprep.subr.mxu0 0.0
    %810 = vmatpush1.msra.mxu0 0.0
    %811 = vmatprep.subr.mxu0 0.0
    %812 = vmatpush1.msra.mxu0 0.0
    %813 = vmatprep.subr.mxu0 0.0
    %814 = vmatpush1.msra.mxu0 0.0
    %815 = vmatprep.subr.mxu0 0.0
    %816 = vmatpush1.msra.mxu0 0.0
    %817 = vmatprep.subr.mxu0 0.0
    %818 = vmatpush1.msra.mxu0 0.0
    %819 = vmatprep.subr.mxu0 0.0
    %820 = vmatpush1.msra.mxu0 0.0
    %821 = vmatprep.subr.mxu0 0.0
    %822 = vmatpush1.msra.mxu0 0.0
    %823 = vmatprep.subr.mxu0 0.0
    %824 = vmatpush1.msra.mxu0 0.0
    %825 = vmatprep.subr.mxu0 0.0
    %826 = vmatpush1.msra.mxu0 0.0
    %827 = vmatprep.mubr.f32.mxu0 0.0
    %828 = vmatmul.mubr.f32.gmra.mrb[0].mxu0 %v758
    %v829 = vpop.f32.mrb[0].mxu0
    %v830 = vadd.f32 %v755, %v829
    %v831 = vpop.f32.mrb[0].mxu0
    %832 = vmatprep.mubr.f32.mxu0 0.0
    %833 = vmatmul.mubr.f32.gmra.mrb[0].mxu0 %v761
    %v834 = vpop.f32.mrb[0].mxu0
    %v835 = vadd.f32 %v755, %v834
    %v836 = vpop.f32.mrb[0].mxu0
    %837 = vdwg.mxu0
    %v838 = vadd.f32 %v663, %v830
    %v839 = vadd.f32 %v664, %v835
    %v840 = vsel %vm72, %v838, 0.0
    %841 = vadd.xlane.f32.xlu0 %v840
    %v842 = vpop.xlane.xlu0 %841
    %v843 = vsel %vm72, %v839, 0.0
    %844 = vadd.xlane.f32.xlu0 %v843
    %v845 = vpop.xlane.xlu0 %844
    %v846 = vmul.f32 %v842, %v632
    %v847 = vmul.f32 %v845, %v632
    %v848 = vsub.f32 %v838, %v846
    %v849 = vsub.f32 %v839, %v847
    %v850 = vmul.f32 %v848, %v848
    %v851 = vmul.f32 %v849, %v849
    %v852 = vsel %vm72, %v850, 0.0
    %853 = vadd.xlane.f32.xlu0 %v852
    %v854 = vpop.xlane.xlu0 %853
    %v855 = vsel %vm72, %v851, 0.0
    %856 = vadd.xlane.f32.xlu0 %v855
    %v857 = vpop.xlane.xlu0 %856
    %v858 = vmul.f32 %v854, %v632
    %v859 = vmul.f32 %v857, %v632
    %v860 = vadd.f32 %v858, 1e-05
    %v861 = vadd.f32 %v859, 1e-05
    %v862 = vrsqrt.pop %v860
    %v863 = vrsqrt.pop %v861
    %v864 = vmul.f32 %v848, %v862
    %v865 = vmul.f32 %v849, %v863
    %v866 = vlaneseq
    %v867 = vshrl.u32 %v866, 7
    %v868 = vsub.s32 6, %v867
    %v869 = vrot.slane %v67, %v868
    %v870 = vmul.f32 %v864, %v869
    %v871 = vmul.f32 %v865, %v869
    %v872 = vlaneseq
    %v873 = vshrl.u32 %v872, 7
    %v874 = vsub.s32 7, %v873
    %v875 = vrot.slane %v67, %v874
    %v876 = vadd.f32 %v870, %v875
    %v877 = vadd.f32 %v871, %v875
    %878 = vst.msk [vmem:[#allocation5] sm:$0xff] %vm72, %v876
    %879 = vst.msk [vmem:[#allocation5 + $0x8] sm:$0xff] %vm72, %v877
    // Predicated region
    $region18: #{tpu_custom_call.1} parent=1 // pred_check
      _
    $region19: #{tpu_custom_call.1} parent=1 // pred_check_branch
      %881 = sbr.rel (0) target = $region21
    $region20: #{tpu_custom_call.1} parent=1 // pred_region
      %s883 = ssub.s32 256, 256
      %884 = vsyncadd [#allocation4], %s883
      %s885 = sshll.u32 [#allocation5], 4
      %s886 = int_to_ptr.vmem [resolvable:$true] %s885
      %891 = dma.vmem_to_hbm [thread:$0]  %s886, 256, %s3, [#allocation4], 128, 128, 8
    $region21: #{tpu_custom_call.1} parent=1 // pred_fallthru
      _
    // Predicated region
    $region22: #{tpu_custom_call.1} parent=1 // pred_check
      _
    $region23: #{tpu_custom_call.1} parent=1 // pred_check_branch
      %893 = sbr.rel (0) target = $region25
    $region24: #{tpu_custom_call.1} parent=1 // pred_region
      %894 = dma.done [#allocation4], 256
    $region25: #{tpu_custom_call.1} parent=1 // pred_fallthru
      _
    %895 = vsyncpa [#allocation3], 1
    %896 = vsyncpa [#allocation4], 1

</llo_original>
